<compile_context>
chip_gen: v6e
topology: v6e:2x2x1
jax: 0.10.0
libtpu: 0.0.40
codegen_flags: <defaults>
</compile_context>

<pallas_src>
import jax
import jax.numpy as jnp
from jax.experimental import pallas as pl
from jax.experimental.pallas import tpu as pltpu


_LANE = 128
_MAX_TILE_ROWS = 8192   # (8192, 128) f32 = 4 MiB per input block
_MIN_SPLIT_ROWS = 1024  # below this the whole slab goes in one block


def _make_kernel(tile_rows, acc_rows, rows, steps_per_core, mask_needed):
    """Builds the kernel specialized (at trace time) for static sizes."""

    def kernel(p_ref, r_ref, o_ref):
        c = pl.program_id(0)          # core / row-half index ("parallel")
        i = pl.program_id(1)          # reduction step ("arbitrary")

        @pl.when(i == 0)
        def _():
            o_ref[...] = jnp.zeros_like(o_ref)

        # Cast per-tile (free on the VPU relative to the HBM stream); log on
        # the EUP, multiply on the VPU.  log(p <= 0) -> -inf/NaN exactly like
        # the PyTorch reference (semantics preserved).
        p = p_ref[...].astype(jnp.float32)
        r = r_ref[...].astype(jnp.float32)
        prod = jnp.log(p) * r

        if mask_needed:
            # Zero out rows past the end of the real data (partial last block
            # and/or padded grid steps).  Select, not multiply, so NaNs from
            # garbage lanes cannot leak through.
            step = c * steps_per_core + i
            rem = rows - step * tile_rows
            row_ids = jax.lax.broadcasted_iota(jnp.int32, (tile_rows, _LANE), 0)
            prod = jnp.where(row_ids < rem, prod, 0.0)

        # Reduce the (tile_rows, 128) product onto the resident
        # (acc_rows, 128) output block using vreg-aligned VPU adds only.
        if acc_rows == 1:
            o_ref[...] += jnp.sum(prod, axis=0, keepdims=True)
        else:
            full = (tile_rows // acc_rows) * acc_rows
            main = prod if full == tile_rows else prod[:full]
            o_ref[...] += jnp.sum(main.reshape(-1, acc_rows, _LANE), axis=0)
            if full != tile_rows:  # leftover (< acc_rows) rows, single-block case
                o_ref[0:1, :] += jnp.sum(prod[full:], axis=0, keepdims=True)

    return kernel


def rl_loss(probs: jax.Array, rewards: jax.Array) -> jax.Array:
    """Computes -sum(log(probs) * rewards) with a Pallas TPU kernel."""
    assert probs.shape == rewards.shape, "probs and rewards must match in shape"

    out_dtype = jnp.promote_types(probs.dtype, rewards.dtype)
    if not jnp.issubdtype(out_dtype, jnp.floating):
        out_dtype = jnp.float32

    p_flat = probs.reshape(-1)
    r_flat = rewards.reshape(-1)
    total = p_flat.size

    if total == 0:
        return jnp.zeros((), out_dtype)

    # Ragged tail (< 128 elements): tiny plain-jnp sum in the wrapper so the
    # kernel only ever sees a lane-dense [rows, 128] slab.
    tail = total % _LANE
    bulk = total - tail
    tail_sum = jnp.float32(0.0)
    if tail:
        tp = p_flat[bulk:].astype(jnp.float32)
        tr = r_flat[bulk:].astype(jnp.float32)
        tail_sum = jnp.sum(jnp.log(tp) * tr)
    if bulk == 0:
        return (-tail_sum).astype(out_dtype)

    if tail:
        # Rare ragged case: prefix slice may copy; bulk of the work still
        # streams once through the kernel.
        p2 = p_flat[:bulk].reshape(-1, _LANE)
        r2 = r_flat[:bulk].reshape(-1, _LANE)
    else:
        # Common case: pure reshape, zero extra HBM traffic.
        p2 = p_flat.reshape(-1, _LANE)
        r2 = r_flat.reshape(-1, _LANE)
    rows = bulk // _LANE

    if rows <= _MIN_SPLIT_ROWS:
        # Small input: one block equal to the full slab, grid (1, 1).
        num_cores, steps_per_core, tile_rows = 1, 1, rows
    else:
        # Balanced split: 2 row-halves (2 TensorCores on v7x, plain serial
        # loop elsewhere), each covered by `steps_per_core` blocks of at most
        # _MAX_TILE_ROWS rows.  Balancing keeps padded/duplicate blocks tiny.
        num_cores = 2
        steps_per_core = pl.cdiv(rows, num_cores * _MAX_TILE_ROWS)
        tile_rows = pl.cdiv(rows, num_cores * steps_per_core)
        tile_rows = -(-tile_rows // 32) * 32   # sublane/accumulator aligned

    total_blocks = pl.cdiv(rows, tile_rows)
    capacity = num_cores * steps_per_core * tile_rows
    mask_needed = capacity != rows
    needs_clamp = (num_cores * steps_per_core) != total_blocks

    if tile_rows >= 32:
        acc_rows = 32        # 4 independent vreg accumulation chains
    elif tile_rows >= 8:
        acc_rows = 8
    else:
        acc_rows = 1

    def in_index_map(c, i):
        step = c * steps_per_core + i
        if needs_clamp:
            # Padded grid steps re-read the last valid block; their
            # contribution is masked to zero inside the kernel.
            step = jnp.minimum(step, total_blocks - 1)
        return (step, 0)

    kernel = _make_kernel(tile_rows, acc_rows, rows, steps_per_core, mask_needed)

    # Double-buffered inputs + generous headroom; explicit so the 4 MiB blocks
    # also fit under v5e's 16 MiB default scoped VMEM (all chips have >=64 MiB).
    in_bytes = 2 * tile_rows * _LANE * (p2.dtype.itemsize + r2.dtype.itemsize)
    vmem_limit = int(min(max(in_bytes + (4 << 20), 32 << 20), 64 << 20))

    partials = pl.pallas_call(
        kernel,
        out_shape=jax.ShapeDtypeStruct((num_cores, acc_rows, _LANE), jnp.float32),
        grid_spec=pltpu.PrefetchScalarGridSpec(
            num_scalar_prefetch=0,
            grid=(num_cores, steps_per_core),
            in_specs=[
                pl.BlockSpec((tile_rows, _LANE), in_index_map),
                pl.BlockSpec((tile_rows, _LANE), in_index_map),
            ],
            # Lane-dense per-core partials; block index constant along the
            # reduction axis -> output stays resident in VMEM as accumulator.
            out_specs=pl.BlockSpec((None, acc_rows, _LANE), lambda c, i: (c, 0, 0)),
        ),
        compiler_params=pltpu.CompilerParams(
            dimension_semantics=("parallel", "arbitrary"),
            vmem_limit_bytes=vmem_limit,
        ),
    )(p2, r2)

    # Final cross-lane/sublane reduce + negation on the tiny partials array.
    loss = -(jnp.sum(partials) + tail_sum)
    return loss.astype(out_dtype)


if __name__ == "__main__":
    key = jax.random.PRNGKey(0)
    k1, k2, k3, k4, k5, k6, k7, k8 = jax.random.split(key, 8)

    # --- Test 1: small [B, T] table, f32 (single-block path) ---
    B, T = 8, 32
    probs = jax.random.uniform(k1, (B, T), jnp.float32, minval=1e-3, maxval=1.0)
    rewards = jax.random.normal(k2, (B, T), jnp.float32)
    out = rl_loss(probs, rewards)
    jax.block_until_ready(out)
    ref = -jnp.sum(jnp.log(probs) * rewards)
    assert jnp.allclose(out, ref, rtol=1e-5, atol=1e-5), (out, ref)

    # --- Test 2: ragged shape -> wrapper tail (<128 elems) + leftover rows ---
    probs2 = jax.random.uniform(k3, (33, 37), jnp.float32, minval=1e-3, maxval=1.0)
    rewards2 = jax.random.normal(k4, (33, 37), jnp.float32)
    out2 = rl_loss(probs2, rewards2)
    ref2 = -jnp.sum(jnp.log(probs2) * rewards2)
    assert jnp.allclose(out2, ref2, rtol=1e-4, atol=1e-3), (out2, ref2)

    # --- Test 3: bf16 inputs (cast happens inside the kernel, not wrapper) ---
    probs3 = jax.random.uniform(k5, (8, 32), jnp.float32,
                                minval=1e-3, maxval=1.0).astype(jnp.bfloat16)
    rewards3 = jax.random.normal(k6, (8, 32), jnp.float32).astype(jnp.bfloat16)
    out3 = rl_loss(probs3, rewards3)
    ref3 = -jnp.sum(jnp.log(probs3.astype(jnp.float32)) * rewards3.astype(jnp.float32))
    assert jnp.allclose(out3.astype(jnp.float32), ref3, rtol=1e-2, atol=1e-2), (out3, ref3)

    # --- Test 4: multi-block path (balanced 2-way split, partial-block mask) ---
    probs4 = jax.random.uniform(k7, (72, 16000), jnp.float32, minval=1e-3, maxval=1.0)
    rewards4 = jax.random.normal(k8, (72, 16000), jnp.float32)
    out4 = rl_loss(probs4, rewards4)
    ref4 = -jnp.sum(jnp.log(probs4) * rewards4)
    assert jnp.allclose(out4, ref4, rtol=1e-3, atol=0.5), (out4, ref4)

    jax.block_until_ready((out, out2, out3, out4))
    print("KERNEL_OK")
</pallas_src>

<mosaic_0001>
module attributes {stable_mosaic.version = 11 : i64} {
  func.func @kernel(%arg0: i32, %arg1: i32, %arg2: memref<2x128xf32, #tpu.memory_space<vmem>>, %arg3: memref<2x128xf32, #tpu.memory_space<vmem>>, %arg4: memref<1x1x128xf32, #tpu.memory_space<vmem>>) attributes {dimension_semantics = [#tpu.dimension_semantics<parallel>, #tpu.dimension_semantics<arbitrary>], iteration_bounds = array<i64: 1, 1>, scalar_prefetch = 0 : i64, scratch_operands = 0 : i64, tpu.core_type = #tpu.core_type<tc>, window_params = [{transform_indices = @transform_0, window_bounds = array<i64: 2, 128>}, {transform_indices = @transform_1, window_bounds = array<i64: 2, 128>}, {transform_indices = @transform_2, window_bounds = array<i64: 1, 1, 128>}]} {
    %c0_i32 = arith.constant 0 : i32
    %0 = arith.cmpi eq, %arg1, %c0_i32 : i32
    %1 = arith.extui %0 : i1 to i32
    %c0_i32_0 = arith.constant 0 : i32
    %2 = arith.cmpi ne, %1, %c0_i32_0 : i32
    scf.if %2 {
      %cst_10 = arith.constant 0.000000e+00 : f32
      %15 = vector.broadcast %cst_10 : f32 to vector<1x128xf32>
      %c0_11 = arith.constant 0 : index
      %c0_12 = arith.constant 0 : index
      %c0_13 = arith.constant 0 : index
      %16 = vector.load %arg4[%c0_11, %c0_12, %c0_13] : memref<1x1x128xf32, #tpu.memory_space<vmem>>, vector<1x1x128xf32>
      %17 = vector.shape_cast %16 : vector<1x1x128xf32> to vector<1x128xf32>
      %18 = vector.shape_cast %15 : vector<1x128xf32> to vector<1x1x128xf32>
      tpu.vector_store %arg4[%c0_11, %c0_12, %c0_13], %18 {strides = array<i32>} : memref<1x1x128xf32, #tpu.memory_space<vmem>>, vector<1x1x128xf32>,
    } else {
    }
    %c0 = arith.constant 0 : index
    %c0_1 = arith.constant 0 : index
    %3 = vector.load %arg2[%c0, %c0_1] : memref<2x128xf32, #tpu.memory_space<vmem>>, vector<2x128xf32>
    %c0_2 = arith.constant 0 : index
    %c0_3 = arith.constant 0 : index
    %4 = vector.load %arg3[%c0_2, %c0_3] : memref<2x128xf32, #tpu.memory_space<vmem>>, vector<2x128xf32>
    %5 = math.log %3 : vector<2x128xf32>
    %6 = arith.mulf %5, %4 : vector<2x128xf32>
    %c0_4 = arith.constant 0 : index
    %c0_5 = arith.constant 0 : index
    %c0_6 = arith.constant 0 : index
    %7 = vector.load %arg4[%c0_4, %c0_5, %c0_6] : memref<1x1x128xf32, #tpu.memory_space<vmem>>, vector<1x1x128xf32>
    %8 = vector.shape_cast %7 : vector<1x1x128xf32> to vector<1x128xf32>
    %cst = arith.constant dense<0.000000e+00> : vector<128xf32>
    %9 = vector.multi_reduction <add>, %6, %cst [0] : vector<2x128xf32> to vector<128xf32>
    %10 = vector.shape_cast %9 : vector<128xf32> to vector<1x128xf32>
    %11 = arith.addf %8, %10 : vector<1x128xf32>
    %c0_7 = arith.constant 0 : index
    %c0_8 = arith.constant 0 : index
    %c0_9 = arith.constant 0 : index
    %12 = vector.load %arg4[%c0_7, %c0_8, %c0_9] : memref<1x1x128xf32, #tpu.memory_space<vmem>>, vector<1x1x128xf32>
    %13 = vector.shape_cast %12 : vector<1x1x128xf32> to vector<1x128xf32>
    %14 = vector.shape_cast %11 : vector<1x128xf32> to vector<1x1x128xf32>
    tpu.vector_store %arg4[%c0_7, %c0_8, %c0_9], %14 {strides = array<i32>} : memref<1x1x128xf32, #tpu.memory_space<vmem>>, vector<1x1x128xf32>,
    return
  }
  func.func @transform_0(%arg0: i32, %arg1: i32) -> (i32, i32) {
    %c1_i32 = arith.constant 1 : i32
    %0 = arith.muli %arg0, %c1_i32 : i32
    %1 = arith.addi %0, %arg1 : i32
    %c0_i32 = arith.constant 0 : i32
    %c0_i32_0 = arith.constant 0 : i32
    return %1, %c0_i32 : i32, i32
  }
  func.func @transform_1(%arg0: i32, %arg1: i32) -> (i32, i32) {
    %c1_i32 = arith.constant 1 : i32
    %0 = arith.muli %arg0, %c1_i32 : i32
    %1 = arith.addi %0, %arg1 : i32
    %c0_i32 = arith.constant 0 : i32
    %c0_i32_0 = arith.constant 0 : i32
    return %1, %c0_i32 : i32, i32
  }
  func.func @transform_2(%arg0: i32, %arg1: i32) -> (i32, i32, i32) {
    %c0_i32 = arith.constant 0 : i32
    %c0_i32_0 = arith.constant 0 : i32
    %c0_i32_1 = arith.constant 0 : i32
    return %arg0, %c0_i32, %c0_i32_0 : i32, i32, i32
  }
}

</mosaic_0001>

<llo_original>
// kernel: tpu_custom_call.1
$region0: #{tpu_custom_call.1}
  #allocation0 [shape = 'u32[]', space=smem, size = 0x4, offset = 0x4, fixed_abs, tag = 'smem constant byte address 0x4 - core index']
  #allocation1 [shape = 'u32[144,128]{1,0:T(1,128)}', space=vmem, size = 0x12000, scoped, tag = 'internal scratch']
  %s0 = inlined_call_operand.hbm [shape: f32[2,128], index: 0, kind: input, shape index: {}]
  %s1 = inlined_call_operand.hbm [shape: f32[2,128], index: 1, kind: input, shape index: {}]
  %s2 = inlined_call_operand.hbm [shape: f32[1,1,128], index: 2, kind: output, shape index: {}]
  %s3 = sld [smem:[#allocation0]]
  $region30: #{tpu_custom_call.1} parent=0
    _
  %s5 = ssub.s32 1, %s3
  %s6 = scalar_select 0, %s5, %s3
  $region1: #{tpu_custom_call.1} parent=0
    #allocation2 [shape = 'u8[1024]{0}', space=vmem, size = 0x400, scoped, tag = 'input window, operand 0, single buffered']
    #allocation3 [shape = 's32[1]{0}', space=sflag, size = 0x4, scoped, tag = 'scoped memory for tpu_custom_call.1']
    #allocation4 [shape = 's32[1]{0}', space=sflag, size = 0x4, scoped, tag = 'scoped memory for tpu_custom_call.1']
    #allocation5 [shape = 'u8[1024]{0}', space=vmem, size = 0x400, scoped, tag = 'input window, operand 1, single buffered']
    #allocation6 [shape = 's32[1]{0}', space=sflag, size = 0x4, scoped, tag = 'scoped memory for tpu_custom_call.1']
    #allocation7 [shape = 'u8[512]{0}', space=vmem, size = 0x400, scoped, tag = 'output window, operand 0, single buffered']
    %7 = vsyncpa [#allocation3], 0
    %8 = vsyncpa [#allocation6], 0
    %9 = vsyncpa [#allocation4], 0
    // Predicated region
    $region2: #{tpu_custom_call.1} parent=1 // pred_check
      _
    $region3: #{tpu_custom_call.1} parent=1 // pred_check_branch
      %11 = sbr.rel (0) target = $region5
    $region4: #{tpu_custom_call.1} parent=1 // pred_region
      %s12 = sadd.s32 0, 0
      %s14 = ssub.s32 32, 32
      %15 = vsyncadd [#allocation3], %s14
      %s16 = smul.addr %s12, 32
      %s17 = scalar_lea.hbm %s0, %s16
      %s19 = sshll.u32 [#allocation2], 4
      %s20 = int_to_ptr.vmem [resolvable:$true] %s19
      %22 = dma.hbm_to_vmem [thread:$0]  %s17, 32, %s20, [#allocation3]
    $region5: #{tpu_custom_call.1} parent=1 // pred_fallthru
      _
    // Predicated region
    $region6: #{tpu_custom_call.1} parent=1 // pred_check
      _
    $region7: #{tpu_custom_call.1} parent=1 // pred_check_branch
      %24 = sbr.rel (0) target = $region9
    $region8: #{tpu_custom_call.1} parent=1 // pred_region
      %s25 = sadd.s32 0, 0
      %s27 = ssub.s32 32, 32
      %28 = vsyncadd [#allocation6], %s27
      %s29 = smul.addr %s25, 32
      %s30 = scalar_lea.hbm %s1, %s29
      %s32 = sshll.u32 [#allocation5], 4
      %s33 = int_to_ptr.vmem [resolvable:$true] %s32
      %35 = dma.hbm_to_vmem [thread:$0]  %s30, 32, %s33, [#allocation6]
    $region9: #{tpu_custom_call.1} parent=1 // pred_fallthru
      _
    // Predicated region
    $region10: #{tpu_custom_call.1} parent=1 // pred_check
      _
    $region11: #{tpu_custom_call.1} parent=1 // pred_check_branch
      %37 = sbr.rel (0) target = $region13
    $region12: #{tpu_custom_call.1} parent=1 // pred_region
      %38 = dma.done [#allocation3], 32
    $region13: #{tpu_custom_call.1} parent=1 // pred_fallthru
      _
    // Predicated region
    $region14: #{tpu_custom_call.1} parent=1 // pred_check
      _
    $region15: #{tpu_custom_call.1} parent=1 // pred_check_branch
      %40 = sbr.rel (0) target = $region17
    $region16: #{tpu_custom_call.1} parent=1 // pred_region
      %41 = dma.done [#allocation6], 32
    $region17: #{tpu_custom_call.1} parent=1 // pred_fallthru
      _
    %s42 = sadd.s32 0, 0
    %s43 = sadd.s32 0, 0
    %p44 = scmp.eq.s32.totalorder 0, 0
    // Predicated region
    $region18: #{tpu_custom_call.1} parent=1 // pred_check
      %p45 = pneg %p44
    $region19: #{tpu_custom_call.1} parent=1 // pred_check_branch
      %47 = sbr.rel (%p45) target = $region21
    $region20: #{tpu_custom_call.1} parent=1 // pred_region
      %48 = vst [vmem:[#allocation7] sm:$0x1] 0.0
    $region21: #{tpu_custom_call.1} parent=1 // pred_fallthru
      _
    %v49 = vld [vmem:[#allocation2] sm:$0x3]
    %v50 = vld [vmem:[#allocation5] sm:$0x3]
    %v51 = vlog2.pop %v49
    %v52 = vmul.f32 %v51, 0.6931472
    %v53 = vmul.f32 %v52, %v50
    %v54 = vld [vmem:[#allocation7] sm:$0x1]
    %vm55 = vcmask 1041408
    %v56 = vsel %vm55, %v53, 0.0
    %v57 = vrot.slane %v56, 4
    %v58 = vadd.f32 %v56, %v57
    %v59 = vrot.slane %v58, 2
    %v60 = vadd.f32 %v58, %v59
    %v61 = vrot.slane %v60, 1
    %v62 = vadd.f32 %v60, %v61
    %v63 = vadd.f32 %v54, %v62
    %64 = vst [vmem:[#allocation7] sm:$0x1] %v63
    // Predicated region
    $region22: #{tpu_custom_call.1} parent=1 // pred_check
      _
    $region23: #{tpu_custom_call.1} parent=1 // pred_check_branch
      %66 = sbr.rel (0) target = $region25
    $region24: #{tpu_custom_call.1} parent=1 // pred_region
      %s68 = ssub.s32 16, 16
      %69 = vsyncadd [#allocation4], %s68
      %s71 = sshll.u32 [#allocation7], 4
      %s72 = int_to_ptr.vmem [resolvable:$true] %s71
      %74 = dma.vmem_to_hbm [thread:$0]  %s72, 16, %s2, [#allocation4]
    $region25: #{tpu_custom_call.1} parent=1 // pred_fallthru
      _
    // Predicated region
    $region26: #{tpu_custom_call.1} parent=1 // pred_check
      _
    $region27: #{tpu_custom_call.1} parent=1 // pred_check_branch
      %76 = sbr.rel (0) target = $region29
    $region28: #{tpu_custom_call.1} parent=1 // pred_region
      %77 = dma.done [#allocation4], 16
    $region29: #{tpu_custom_call.1} parent=1 // pred_fallthru
      _
    %78 = vsyncpa [#allocation3], 1
    %79 = vsyncpa [#allocation6], 1
    %80 = vsyncpa [#allocation4], 1

</llo_original>
